<compile_context>
chip_gen: v7x
topology: tpu7x:2x2x1
jax: 0.10.0
libtpu: 0.0.40
codegen_flags: <defaults>
</compile_context>

<pallas_src>
import functools

import jax
import jax.numpy as jnp
from jax.experimental import pallas as pl
from jax.experimental.pallas import tpu as pltpu

_EPS = 1e-12  # F.normalize default eps


def _round_up(x, m):
    return -(-x // m) * m


def _fusion_kernel(w_ref, x_ref, o_ref, *, M, D, B, tile):
    # w_ref: (M,)        softmax-normalized weights (SMEM, scalar prefetch)
    # x_ref: (tile, M*D) flat batch tile of embeddings
    # o_ref: (tile, D)   fused output tile
    x = x_ref[...]

    # Zero-mask rows past the logical batch (partial last block) so garbage
    # never feeds the rsqrt path.  Trace-time branch: dropped when B % tile == 0.
    if B % tile != 0:
        row = (pl.program_id(0) * tile
               + jax.lax.broadcasted_iota(jnp.int32, (tile, 1), 0))
        x = jnp.where(row < B, x, jnp.zeros_like(x))

    acc = jnp.zeros((tile, D), jnp.float32)
    for m in range(M):  # M is small; fully unrolled static lane slices
        seg = x[:, m * D:(m + 1) * D].astype(jnp.float32)          # (tile, D)
        sq = jnp.sum(seg * seg, axis=-1, keepdims=True)            # (tile, 1)  XLU
        # 1 / max(||x||, eps) == rsqrt(max(||x||^2, eps^2))  (EUP), weight folded in
        scale = jax.lax.rsqrt(jnp.maximum(sq, _EPS * _EPS)) * w_ref[m]
        acc = acc + seg * scale
    o_ref[...] = acc.astype(o_ref.dtype)


def _vmem_plan():
    # Generation-aware VMEM plan: budget ~1/3 of per-core capacity for the
    # pipeline working set, and raise the scoped limit with some headroom.
    try:
        cap = pltpu.get_tpu_info().vmem_capacity_bytes
    except Exception:
        cap = 64 * 1024 * 1024  # conservative fallback: v7x per-TensorCore
    budget = cap // 3
    limit = min(cap - (8 << 20), budget + (8 << 20))
    return budget, int(limit)


def _pick_batch_tile(B, MD, D, in_itemsize, out_itemsize, budget_bytes):
    # sublane packing: 8 rows per tile for 32-bit dtypes, 16 for 16-bit, 32 for 8-bit
    sub = 8 * (4 // in_itemsize)
    if B <= sub:
        return B  # single exact block (both block dims == full array dims)
    # VMEM bytes per batch row across the working set:
    #   double-buffered input block + double-buffered output block
    #   + f32 copy of the tile + a handful of (tile, D) / (tile, 1) f32 temps.
    per_row = (2 * MD * in_itemsize
               + 2 * D * out_itemsize
               + MD * 4
               + 4 * D * 4)
    tile = max(sub, (budget_bytes // per_row) // sub * sub)
    tile = min(tile, _round_up(B, sub))
    # Keep at least 2 grid steps so the "parallel" batch axis can shard across
    # both TensorCores on v7x (neutral on single-TC v5e / v6e).
    if tile >= B:
        tile = _round_up((B + 1) // 2, sub)
    return tile


def multi_modal_fusion(embs: jax.Array, weight: jax.Array, *,
                       batch_tile: int = None) -> jax.Array:
    """embs: (B, M, D);  weight: (M, 1) float32  ->  (B, D)."""
    B, M, D = embs.shape
    assert weight.shape == (M, 1)
    MD = M * D
    in_itemsize = jnp.dtype(embs.dtype).itemsize
    sub = 8 * (4 // in_itemsize)

    # Softmax over the modal axis, hoisted out of the kernel.
    w = jax.nn.softmax(weight.astype(jnp.float32).reshape(M), axis=0)  # (M,)

    # Lane-dense HBM layout: one flat M*D lane axis instead of (8,128)-padded
    # (M, D) minor dims.  Row-major flatten keeps values and order identical.
    x = embs.reshape(B, MD)

    budget, vmem_limit = _vmem_plan()
    if batch_tile is None:
        batch_tile = _pick_batch_tile(B, MD, D, in_itemsize, in_itemsize, budget)
    else:
        batch_tile = min(batch_tile, _round_up(B, sub))
        if batch_tile < B and batch_tile % sub:
            batch_tile = _round_up(batch_tile, sub)

    n_tiles = pl.cdiv(B, batch_tile)
    kernel = functools.partial(_fusion_kernel, M=M, D=D, B=B, tile=batch_tile)

    return pl.pallas_call(
        kernel,
        out_shape=jax.ShapeDtypeStruct((B, D), embs.dtype),
        grid_spec=pltpu.PrefetchScalarGridSpec(
            num_scalar_prefetch=1,  # softmaxed weights land in SMEM
            grid=(n_tiles,),
            in_specs=[pl.BlockSpec((batch_tile, MD), lambda b, w_s: (b, 0))],
            out_specs=pl.BlockSpec((batch_tile, D), lambda b, w_s: (b, 0)),
        ),
        compiler_params=pltpu.CompilerParams(
            dimension_semantics=("parallel",),
            vmem_limit_bytes=vmem_limit,
        ),
    )(w, x)


def _reference(embs, weight):
    w = jax.nn.softmax(weight.astype(jnp.float32), axis=0).reshape(1, -1, 1)
    xf = embs.astype(jnp.float32)
    norm = jnp.maximum(jnp.linalg.norm(xf, axis=2, keepdims=True), _EPS)
    return jnp.sum((xf / norm) * w, axis=1).astype(embs.dtype)


if __name__ == "__main__":
    key = jax.random.PRNGKey(0)
    B, M, D = 2, 4, 32  # small shapes: batch=2, modal_num=4, hidden=32

    k_embs, _ = jax.random.split(key)
    embs = jax.random.normal(k_embs, (B, M, D), dtype=jnp.float32)
    # deterministic parameter matching nn.Parameter(torch.ones((M, 1))), perturbed
    # slightly so the softmax is non-trivial but still deterministic.
    weight = jnp.ones((M, 1), dtype=jnp.float32)
    weight = weight + 0.1 * jnp.arange(M, dtype=jnp.float32).reshape(M, 1)

    out = jax.block_until_ready(multi_modal_fusion(embs, weight))
    ref = _reference(embs, weight)
    assert out.shape == (B, D)
    assert jnp.allclose(out, ref, atol=1e-5, rtol=1e-5), "mismatch vs reference"

    # Ragged batch + multi-step grid + in-kernel tail masking (explicit tile).
    B2 = 37
    embs2 = jax.random.normal(jax.random.PRNGKey(1), (B2, M, D), dtype=jnp.float32)
    out2 = jax.block_until_ready(multi_modal_fusion(embs2, weight, batch_tile=8))
    assert out2.shape == (B2, D)
    assert jnp.allclose(out2, _reference(embs2, weight), atol=1e-5, rtol=1e-5)

    # Default byte-sized tiling path (partial last block, no jnp.pad anywhere).
    out3 = jax.block_until_ready(multi_modal_fusion(embs2, weight))
    assert jnp.allclose(out3, _reference(embs2, weight), atol=1e-5, rtol=1e-5)

    print("KERNEL_OK")
</pallas_src>

<mosaic_0001>
module attributes {stable_mosaic.version = 11 : i64} {
  func.func @_fusion_kernel(%arg0: i32, %arg1: memref<4xf32, #tpu.memory_space<smem>>, %arg2: memref<2x128xf32, #tpu.memory_space<vmem>>, %arg3: memref<2x32xf32, #tpu.memory_space<vmem>>) attributes {dimension_semantics = [#tpu.dimension_semantics<parallel>], iteration_bounds = array<i64: 1>, scalar_prefetch = 1 : i64, scratch_operands = 0 : i64, tpu.core_type = #tpu.core_type<tc>, window_params = [{transform_indices = @transform_0, window_bounds = array<i64: 2, 128>}, {transform_indices = @transform_1, window_bounds = array<i64: 2, 32>}]} {
    %c0 = arith.constant 0 : index
    %c0_0 = arith.constant 0 : index
    %0 = vector.load %arg2[%c0, %c0_0] : memref<2x128xf32, #tpu.memory_space<vmem>>, vector<2x128xf32>
    %cst = arith.constant 0.000000e+00 : f32
    %1 = vector.broadcast %cst : f32 to vector<2x32xf32>
    %2 = vector.extract_strided_slice %0 {offsets = [0, 0], sizes = [2, 32], strides = [1, 1]} : vector<2x128xf32> to vector<2x32xf32>
    %3 = arith.mulf %2, %2 : vector<2x32xf32>
    %cst_1 = arith.constant dense<0.000000e+00> : vector<2xf32>
    %4 = vector.multi_reduction <add>, %3, %cst_1 [1] : vector<2x32xf32> to vector<2xf32>
    %5 = vector.shape_cast %4 : vector<2xf32> to vector<2x1xf32>
    %cst_2 = arith.constant 1.000000e-24 : f32
    %6 = vector.broadcast %cst_2 : f32 to vector<2x1xf32>
    %7 = arith.maximumf %5, %6 : vector<2x1xf32>
    %8 = math.rsqrt %7 : vector<2x1xf32>
    %c0_3 = arith.constant 0 : index
    %9 = memref.load %arg1[%c0_3] : memref<4xf32, #tpu.memory_space<smem>>
    %10 = vector.broadcast %9 : f32 to vector<2x1xf32>
    %11 = arith.mulf %8, %10 : vector<2x1xf32>
    %12 = vector.broadcast %11 : vector<2x1xf32> to vector<2x32xf32>
    %13 = arith.mulf %2, %12 : vector<2x32xf32>
    %14 = arith.addf %1, %13 : vector<2x32xf32>
    %15 = vector.extract_strided_slice %0 {offsets = [0, 32], sizes = [2, 32], strides = [1, 1]} : vector<2x128xf32> to vector<2x32xf32>
    %16 = arith.mulf %15, %15 : vector<2x32xf32>
    %cst_4 = arith.constant dense<0.000000e+00> : vector<2xf32>
    %17 = vector.multi_reduction <add>, %16, %cst_4 [1] : vector<2x32xf32> to vector<2xf32>
    %18 = vector.shape_cast %17 : vector<2xf32> to vector<2x1xf32>
    %cst_5 = arith.constant 1.000000e-24 : f32
    %19 = vector.broadcast %cst_5 : f32 to vector<2x1xf32>
    %20 = arith.maximumf %18, %19 : vector<2x1xf32>
    %21 = math.rsqrt %20 : vector<2x1xf32>
    %c1 = arith.constant 1 : index
    %22 = memref.load %arg1[%c1] : memref<4xf32, #tpu.memory_space<smem>>
    %23 = vector.broadcast %22 : f32 to vector<2x1xf32>
    %24 = arith.mulf %21, %23 : vector<2x1xf32>
    %25 = vector.broadcast %24 : vector<2x1xf32> to vector<2x32xf32>
    %26 = arith.mulf %15, %25 : vector<2x32xf32>
    %27 = arith.addf %14, %26 : vector<2x32xf32>
    %28 = vector.extract_strided_slice %0 {offsets = [0, 64], sizes = [2, 32], strides = [1, 1]} : vector<2x128xf32> to vector<2x32xf32>
    %29 = arith.mulf %28, %28 : vector<2x32xf32>
    %cst_6 = arith.constant dense<0.000000e+00> : vector<2xf32>
    %30 = vector.multi_reduction <add>, %29, %cst_6 [1] : vector<2x32xf32> to vector<2xf32>
    %31 = vector.shape_cast %30 : vector<2xf32> to vector<2x1xf32>
    %cst_7 = arith.constant 1.000000e-24 : f32
    %32 = vector.broadcast %cst_7 : f32 to vector<2x1xf32>
    %33 = arith.maximumf %31, %32 : vector<2x1xf32>
    %34 = math.rsqrt %33 : vector<2x1xf32>
    %c2 = arith.constant 2 : index
    %35 = memref.load %arg1[%c2] : memref<4xf32, #tpu.memory_space<smem>>
    %36 = vector.broadcast %35 : f32 to vector<2x1xf32>
    %37 = arith.mulf %34, %36 : vector<2x1xf32>
    %38 = vector.broadcast %37 : vector<2x1xf32> to vector<2x32xf32>
    %39 = arith.mulf %28, %38 : vector<2x32xf32>
    %40 = arith.addf %27, %39 : vector<2x32xf32>
    %41 = vector.extract_strided_slice %0 {offsets = [0, 96], sizes = [2, 32], strides = [1, 1]} : vector<2x128xf32> to vector<2x32xf32>
    %42 = arith.mulf %41, %41 : vector<2x32xf32>
    %cst_8 = arith.constant dense<0.000000e+00> : vector<2xf32>
    %43 = vector.multi_reduction <add>, %42, %cst_8 [1] : vector<2x32xf32> to vector<2xf32>
    %44 = vector.shape_cast %43 : vector<2xf32> to vector<2x1xf32>
    %cst_9 = arith.constant 1.000000e-24 : f32
    %45 = vector.broadcast %cst_9 : f32 to vector<2x1xf32>
    %46 = arith.maximumf %44, %45 : vector<2x1xf32>
    %47 = math.rsqrt %46 : vector<2x1xf32>
    %c3 = arith.constant 3 : index
    %48 = memref.load %arg1[%c3] : memref<4xf32, #tpu.memory_space<smem>>
    %49 = vector.broadcast %48 : f32 to vector<2x1xf32>
    %50 = arith.mulf %47, %49 : vector<2x1xf32>
    %51 = vector.broadcast %50 : vector<2x1xf32> to vector<2x32xf32>
    %52 = arith.mulf %41, %51 : vector<2x32xf32>
    %53 = arith.addf %40, %52 : vector<2x32xf32>
    %c0_10 = arith.constant 0 : index
    %c0_11 = arith.constant 0 : index
    %54 = vector.load %arg3[%c0_10, %c0_11] : memref<2x32xf32, #tpu.memory_space<vmem>>, vector<2x32xf32>
    tpu.vector_store %arg3[%c0_10, %c0_11], %53 {strides = array<i32>} : memref<2x32xf32, #tpu.memory_space<vmem>>, vector<2x32xf32>,
    return
  }
  func.func @transform_0(%arg0: i32, %arg1: memref<4xf32, #tpu.memory_space<smem>>) -> (i32, i32) {
    %c0_i32 = arith.constant 0 : i32
    %c0_i32_0 = arith.constant 0 : i32
    return %arg0, %c0_i32 : i32, i32
  }
  func.func @transform_1(%arg0: i32, %arg1: memref<4xf32, #tpu.memory_space<smem>>) -> (i32, i32) {
    %c0_i32 = arith.constant 0 : i32
    %c0_i32_0 = arith.constant 0 : i32
    return %arg0, %c0_i32 : i32, i32
  }
}

</mosaic_0001>

<llo_original>
// kernel: tpu_custom_call.1
$region0: #{tpu_custom_call.1}
  #allocation0 [shape = 'u32[]', space=smem, size = 0x4, offset = 0x4, fixed_abs, tag = 'smem constant byte address 0x4 - core index']
  #allocation1 [shape = 'u32[144,128]{1,0:T(1,128)}', space=vmem, size = 0x12000, scoped, tag = 'internal scratch']
  #allocation2 [shape = 's32[1]{0}', space=sflag, size = 0x4, scoped, tag = 'scoped memory for tpu_custom_call.1']
  #allocation3 [shape = 'u8[512]{0}', space=smem, size = 0x200, scoped, tag = 'prefetched SMEM operand 0']
  %s0 = inlined_call_operand.hbm [shape: f32[4], index: 0, kind: input, shape index: {}]
  %s1 = inlined_call_operand.vmem [shape: f32[2,128], index: 1, kind: input, shape index: {}]
  %s2 = inlined_call_operand.hbm [shape: f32[2,32], index: 2, kind: output, shape index: {}]
  %s3 = sld [smem:[#allocation0]]
  $region14: #{tpu_custom_call.1} parent=0
    _
  %s5 = ssub.s32 1, %s3
  %s6 = scalar_select 0, %s5, %s3
  %8 = dma.hbm_to_smem %s0, 16, [#allocation3], [#allocation2]
  %9 = dma.done [#allocation2], 16
  %10 = sfence
  $region1: #{tpu_custom_call.1} parent=0
    #allocation4 [shape = 'u8[1024]{0}', space=vmem, size = 0x400, scoped, tag = 'output window, operand 0, single buffered']
    #allocation5 [shape = 's32[1]{0}', space=sflag, size = 0x4, scoped, tag = 'scoped memory for tpu_custom_call.1']
    %11 = vsyncpa [#allocation5], 0
    // Predicated region
    $region2: #{tpu_custom_call.1} parent=1 // pred_check
      _
    $region3: #{tpu_custom_call.1} parent=1 // pred_check_branch
      %13 = sbr.rel (0) target = $region5
    $region4: #{tpu_custom_call.1} parent=1 // pred_region
      _
    $region5: #{tpu_custom_call.1} parent=1 // pred_fallthru
      _
    %v14 = vld [vmem:[%s1] sm:$0x3]
    %v15 = vmul.f32 %v14, %v14
    %vm16 = vcmask 254976
    %v17 = vsel %vm16, %v15, 0.0
    %18 = vadd.xlane.f32.xlu0 %v17
    %v19 = vpop.xlane.xlu0 %18
    %v20 = vmax.f32 %v19, 1e-24
    %v21 = vrsqrt.pop %v20
    %s22 = sld [smem:[#allocation3]]
    %v23 = vstv %s22
    %v24 = vmul.f32 %v21, %v23
    %v25 = vmul.f32 %v14, %v24
    %v26 = vadd.f32 %v25, 0.0
    %28 = vrot.lane.b32.xlu0 %v15, 96
    %v29 = vpop.permute.xlu0 %28
    %v31 = vsel %vm16, %v29, 0.0
    %32 = vadd.xlane.f32.xlu0 %v31
    %v33 = vpop.xlane.xlu0 %32
    %v34 = vmax.f32 %v33, 1e-24
    %v35 = vrsqrt.pop %v34
    %s36 = sld [smem:[#allocation3 + $0x1]]
    %v37 = vstv %s36
    %v38 = vmul.f32 %v35, %v37
    %v39 = vmul.f32 %v14, %v38
    %41 = vrot.lane.b32.xlu0 %v39, 96
    %v42 = vpop.permute.xlu0 %41
    %v44 = vadd.f32 %v26, %v42
    %45 = vrot.lane.b32.xlu0 %v15, 64
    %v46 = vpop.permute.xlu0 %45
    %v48 = vsel %vm16, %v46, 0.0
    %49 = vadd.xlane.f32.xlu0 %v48
    %v50 = vpop.xlane.xlu0 %49
    %v51 = vmax.f32 %v50, 1e-24
    %v52 = vrsqrt.pop %v51
    %s53 = sld [smem:[#allocation3 + $0x2]]
    %v54 = vstv %s53
    %v55 = vmul.f32 %v52, %v54
    %v56 = vmul.f32 %v14, %v55
    %58 = vrot.lane.b32.xlu0 %v56, 64
    %v59 = vpop.permute.xlu0 %58
    %v61 = vadd.f32 %v44, %v59
    %62 = vrot.lane.b32.xlu0 %v15, 32
    %v63 = vpop.permute.xlu0 %62
    %v65 = vsel %vm16, %v63, 0.0
    %66 = vadd.xlane.f32.xlu0 %v65
    %v67 = vpop.xlane.xlu0 %66
    %v68 = vmax.f32 %v67, 1e-24
    %v69 = vrsqrt.pop %v68
    %s70 = sld [smem:[#allocation3 + $0x3]]
    %v71 = vstv %s70
    %v72 = vmul.f32 %v69, %v71
    %v73 = vmul.f32 %v14, %v72
    %75 = vrot.lane.b32.xlu0 %v73, 32
    %v76 = vpop.permute.xlu0 %75
    %v78 = vadd.f32 %v61, %v76
    %79 = vst.msk [vmem:[#allocation4] sm:$0x3] %vm16, %v78
    // Predicated region
    $region6: #{tpu_custom_call.1} parent=1 // pred_check
      _
    $region7: #{tpu_custom_call.1} parent=1 // pred_check_branch
      %81 = sbr.rel (0) target = $region9
    $region8: #{tpu_custom_call.1} parent=1 // pred_region
      %s83 = ssub.s32 32, 32
      %84 = vsyncadd [#allocation5], %s83
      %s86 = sshll.u32 [#allocation4], 4
      %s87 = int_to_ptr.vmem [resolvable:$true] %s86
      %89 = dma.vmem_to_hbm [thread:$0]  %s87, 32, %s2, [#allocation5]
    $region9: #{tpu_custom_call.1} parent=1 // pred_fallthru
      _
    // Predicated region
    $region10: #{tpu_custom_call.1} parent=1 // pred_check
      _
    $region11: #{tpu_custom_call.1} parent=1 // pred_check_branch
      %91 = sbr.rel (0) target = $region13
    $region12: #{tpu_custom_call.1} parent=1 // pred_region
      %92 = dma.done [#allocation5], 32
    $region13: #{tpu_custom_call.1} parent=1 // pred_fallthru
      _
    %93 = vsyncpa [#allocation5], 1

</llo_original>
